<compile_context>
chip_gen: v6e
topology: v6e:2x2x1
jax: 0.10.0
libtpu: 0.0.40
codegen_flags: <defaults>
</compile_context>

<pallas_src>
import functools

import numpy as np
import jax
import jax.numpy as jnp
from jax.experimental import pallas as pl
from jax.experimental.pallas import tpu as pltpu


def _mtcnn_loss_kernel(slab_ref, out_ref, *, cls_w, bbox_w, lmk_w, ohem):
    slab = slab_ref[...].astype(jnp.float32)          # (N, 30)
    n = slab.shape[0]

    pred = slab[:, 0:15]                              # (N, 15)
    offsets = slab[:, 15:19]                          # (N, 4)
    landmarks = slab[:, 19:29]                        # (N, 10)
    labels = slab[:, 29:30]                           # (N, 1) values in {-2,-1,0,1}

    # ---- (N,N) helpers built ONCE and shared by all three OHEM branches ----
    i_idx = jax.lax.broadcasted_iota(jnp.int32, (n, n), 0)
    j_idx = jax.lax.broadcasted_iota(jnp.int32, (n, n), 1)
    tie = j_idx < i_idx                               # descending-sort tie-break
    ones_col = jnp.ones((n, 1), jnp.float32)          # MXU reduction vector

    def _ohem_topk_mean(loss_col, valid_col):
        # loss_col: (N,1) per-sample losses; valid_col: (N,1) bool mask.
        validf = valid_col.astype(jnp.float32)
        count = jnp.sum(validf, axis=0, keepdims=True)                 # (1,1)
        # k = int(ohem * count); small epsilon keeps parity with Python/f64
        # rounding at exact-integer boundaries (e.g. ohem=0.7, count=10).
        n_keep = jnp.floor(jnp.float32(ohem) * count + jnp.float32(1e-4))
        masked = jnp.where(valid_col, loss_col, jnp.float32(-1e30))    # (N,1)
        masked_t = jnp.transpose(masked)                               # (1,N), XLU
        # ahead[i,j] == 1 iff element j sorts strictly ahead of element i
        # in descending order (value, then lower index wins ties).
        ahead = (masked_t > masked) | ((masked_t == masked) & tie)     # (N,N)
        # Row-sum on the MXU (VPU/XLU are the busy units in this kernel).
        rank = jnp.dot(ahead.astype(jnp.float32), ones_col,
                       preferred_element_type=jnp.float32)             # (N,1)
        kept = (rank < n_keep) & valid_col
        top_sum = jnp.sum(jnp.where(kept, loss_col, 0.0), axis=0, keepdims=True)
        mean = top_sum / n_keep   # NaN if n_keep == 0 (torch.mean of empty topk)
        return mean, count

    # ---- classification loss: BCEWithLogitsLoss applied to sigmoid(pred[:,0]),
    #      exactly as in the reference module (double-sigmoid quirk preserved) ----
    x = 1.0 / (1.0 + jnp.exp(-pred[:, 0:1]))                           # (N,1)
    is_pos = labels == 1.0
    is_part = labels == -1.0
    is_lmk = labels == -2.0
    y = jnp.where(is_pos ^ is_lmk, 1.0, 0.0)                           # (N,1)
    bce = jnp.maximum(x, 0.0) - x * y + jnp.log(1.0 + jnp.exp(-jnp.abs(x)))
    loss_cls, _ = _ohem_topk_mean(bce, labels >= 0.0)

    # ---- bounding-box offset loss ----
    off_per = jnp.mean((pred[:, 1:5] - offsets) ** 2, axis=1, keepdims=True)
    off_mean, off_count = _ohem_topk_mean(off_per, is_pos ^ is_part)
    loss_off = jnp.where(off_count == 0.0, 0.0, off_mean)              # idx.sum()==0 -> 0

    # ---- landmark loss ----
    lmk_per = jnp.mean((pred[:, 5:15] - landmarks) ** 2, axis=1, keepdims=True)
    lmk_mean, lmk_count = _ohem_topk_mean(lmk_per, is_lmk)
    loss_lmk = jnp.where(lmk_count == 0.0, 0.0, lmk_mean)              # idx.sum()==0 -> 0

    total = (jnp.float32(cls_w) * loss_cls
             + jnp.float32(bbox_w) * loss_off
             + jnp.float32(lmk_w) * loss_lmk)

    # Single packed output block: [total, loss_cls, loss_off, loss_lmk].
    out_ref[...] = jnp.concatenate([total, loss_cls, loss_off, loss_lmk], axis=1)


def mtcnn_loss(pred, labels, offsets, landmarks, *,
               cls=1.0, bbox=0.5, landmark=0.5, ohem=0.7):
    n = pred.shape[0]
    # Pack everything into one (N, 30) f32 slab -> single input DMA.
    slab = jnp.concatenate(
        [pred.astype(jnp.float32).reshape(n, 15),
         offsets.astype(jnp.float32).reshape(n, 4),
         landmarks.astype(jnp.float32).reshape(n, 10),
         labels.astype(jnp.float32).reshape(n, 1)],
        axis=1)

    kernel = functools.partial(_mtcnn_loss_kernel,
                               cls_w=float(cls), bbox_w=float(bbox),
                               lmk_w=float(landmark), ohem=float(ohem))

    # VMEM budget: a few live (N,N) f32/bool temporaries + the input slab + slack.
    vmem_bytes = int(min(64 << 20, (4 << 20) + 8 * n * n * 4))

    out = pl.pallas_call(
        kernel,
        out_shape=jax.ShapeDtypeStruct((1, 4), jnp.float32),
        grid=(1,),
        in_specs=[pl.BlockSpec((n, 30), lambda i: (0, 0))],
        out_specs=pl.BlockSpec((1, 4), lambda i: (0, 0)),
        compiler_params=pltpu.CompilerParams(
            dimension_semantics=("arbitrary",),
            vmem_limit_bytes=vmem_bytes),
    )(slab)
    return out[0, 0], out[0, 1], out[0, 2], out[0, 3]


def _reference(pred, labels, offsets, landmarks, cls, bbox, landmark, ohem):
    # NumPy mirror of the PyTorch forward (for sanity checking only).
    pred = np.asarray(pred, np.float32)
    labels = np.asarray(labels)
    offsets = np.asarray(offsets, np.float32)
    landmarks = np.asarray(landmarks, np.float32)

    def topk_mean(v, k):
        if k == 0:
            return np.float32(np.nan)
        return np.float32(np.sort(v)[::-1][:k].mean())

    x = 1.0 / (1.0 + np.exp(-pred[:, 0]))
    y = np.where((labels == 1) ^ (labels == -2), 1.0, 0.0).astype(np.float32)
    mask = labels >= 0
    xm, ym = x[mask], y[mask]
    bce = np.maximum(xm, 0.0) - xm * ym + np.log1p(np.exp(-np.abs(xm)))
    loss_cls = topk_mean(bce, int(ohem * bce.shape[0]))

    idx = (labels == 1) ^ (labels == -1)
    if idx.sum() == 0:
        loss_off = np.float32(0.0)
    else:
        per = np.mean((pred[idx, 1:5] - offsets[idx]) ** 2, axis=1)
        loss_off = topk_mean(per, int(ohem * per.shape[0]))

    idx = labels == -2
    if idx.sum() == 0:
        loss_lmk = np.float32(0.0)
    else:
        per = np.mean((pred[idx, 5:] - landmarks[idx]) ** 2, axis=1)
        loss_lmk = topk_mean(per, int(ohem * per.shape[0]))

    total = cls * loss_cls + bbox * loss_off + landmark * loss_lmk
    return total, loss_cls, loss_off, loss_lmk


if __name__ == "__main__":
    key = jax.random.PRNGKey(0)
    kp, ko, kl = jax.random.split(key, 3)

    N = 24
    # deterministic label pattern: positives, negatives, part-faces, landmark samples
    labels = jnp.tile(jnp.array([1, 0, -1, -2], dtype=jnp.int32), 6)     # (N,)
    pred = jax.random.normal(kp, (N, 15), dtype=jnp.float32)             # (N, 15)
    offsets = jax.random.normal(ko, (N, 4), dtype=jnp.float32)           # (N, 4)
    landmarks = jax.random.normal(kl, (N, 10), dtype=jnp.float32)        # (N, 10)

    out = mtcnn_loss(pred, labels, offsets, landmarks,
                     cls=1.0, bbox=0.5, landmark=0.5, ohem=0.7)
    out = jax.block_until_ready(out)

    ref = _reference(np.array(pred), np.array(labels), np.array(offsets),
                     np.array(landmarks), 1.0, 0.5, 0.5, 0.7)
    for got, want in zip(out, ref):
        np.testing.assert_allclose(np.float32(got), np.float32(want),
                                   rtol=1e-4, atol=1e-5)
    print("KERNEL_OK")
</pallas_src>

<mosaic_0001>
module attributes {stable_mosaic.version = 11 : i64} {
  func.func @_mtcnn_loss_kernel(%arg0: i32, %arg1: memref<24x30xf32, #tpu.memory_space<vmem>>, %arg2: memref<1x4xf32, #tpu.memory_space<vmem>>) attributes {dimension_semantics = [#tpu.dimension_semantics<arbitrary>], iteration_bounds = array<i64: 1>, scalar_prefetch = 0 : i64, scratch_operands = 0 : i64, tpu.core_type = #tpu.core_type<tc>, window_params = [{pipeline_mode = #tpu.pipeline_mode<synchronous>, transform_indices = @transform_0, window_bounds = array<i64: 24, 30>}, {pipeline_mode = #tpu.pipeline_mode<synchronous>, transform_indices = @transform_1, window_bounds = array<i64: 1, 4>}]} {
    %c0 = arith.constant 0 : index
    %c0_0 = arith.constant 0 : index
    %0 = vector.load %arg1[%c0, %c0_0] : memref<24x30xf32, #tpu.memory_space<vmem>>, vector<24x30xf32>
    %1 = vector.extract_strided_slice %0 {offsets = [0, 0], sizes = [24, 15], strides = [1, 1]} : vector<24x30xf32> to vector<24x15xf32>
    %2 = vector.extract_strided_slice %0 {offsets = [0, 15], sizes = [24, 4], strides = [1, 1]} : vector<24x30xf32> to vector<24x4xf32>
    %3 = vector.extract_strided_slice %0 {offsets = [0, 19], sizes = [24, 10], strides = [1, 1]} : vector<24x30xf32> to vector<24x10xf32>
    %4 = vector.extract_strided_slice %0 {offsets = [0, 29], sizes = [24, 1], strides = [1, 1]} : vector<24x30xf32> to vector<24x1xf32>
    %5 = tpu.iota {dimensions = array<i32: 0>} : vector<24x24xi32>
    %6 = tpu.iota {dimensions = array<i32: 1>} : vector<24x24xi32>
    %7 = arith.cmpi slt, %6, %5 : vector<24x24xi32>
    %cst = arith.constant 1.000000e+00 : f32
    %8 = vector.broadcast %cst : f32 to vector<24x1xf32>
    %9 = vector.extract_strided_slice %1 {offsets = [0, 0], sizes = [24, 1], strides = [1, 1]} : vector<24x15xf32> to vector<24x1xf32>
    %cst_1 = arith.constant 0.000000e+00 : f32
    %10 = vector.broadcast %cst_1 : f32 to vector<24x1xf32>
    %11 = arith.subf %10, %9 : vector<24x1xf32>
    %12 = math.exp %11 : vector<24x1xf32>
    %cst_2 = arith.constant 1.000000e+00 : f32
    %13 = vector.broadcast %cst_2 : f32 to vector<24x1xf32>
    %14 = arith.addf %13, %12 : vector<24x1xf32>
    %cst_3 = arith.constant 1.000000e+00 : f32
    %15 = vector.broadcast %cst_3 : f32 to vector<24x1xf32>
    %16 = arith.divf %15, %14 : vector<24x1xf32>
    %cst_4 = arith.constant 1.000000e+00 : f32
    %17 = vector.broadcast %cst_4 : f32 to vector<24x1xf32>
    %18 = arith.cmpf oeq, %4, %17 : vector<24x1xf32>
    %cst_5 = arith.constant -1.000000e+00 : f32
    %19 = vector.broadcast %cst_5 : f32 to vector<24x1xf32>
    %20 = arith.cmpf oeq, %4, %19 : vector<24x1xf32>
    %cst_6 = arith.constant -2.000000e+00 : f32
    %21 = vector.broadcast %cst_6 : f32 to vector<24x1xf32>
    %22 = arith.cmpf oeq, %4, %21 : vector<24x1xf32>
    %23 = arith.xori %18, %22 : vector<24x1xi1>
    %cst_7 = arith.constant 1.000000e+00 : f32
    %cst_8 = arith.constant 0.000000e+00 : f32
    %24 = vector.broadcast %cst_7 : f32 to vector<24x1xf32>
    %25 = vector.broadcast %cst_8 : f32 to vector<24x1xf32>
    %26 = arith.select %23, %24, %25 : vector<24x1xi1>, vector<24x1xf32>
    %cst_9 = arith.constant 0.000000e+00 : f32
    %27 = vector.broadcast %cst_9 : f32 to vector<24x1xf32>
    %28 = arith.maximumf %16, %27 : vector<24x1xf32>
    %29 = arith.mulf %16, %26 : vector<24x1xf32>
    %30 = arith.subf %28, %29 : vector<24x1xf32>
    %31 = math.absf %16 : vector<24x1xf32>
    %cst_10 = arith.constant 0.000000e+00 : f32
    %32 = vector.broadcast %cst_10 : f32 to vector<24x1xf32>
    %33 = arith.subf %32, %31 : vector<24x1xf32>
    %34 = math.exp %33 : vector<24x1xf32>
    %cst_11 = arith.constant 1.000000e+00 : f32
    %35 = vector.broadcast %cst_11 : f32 to vector<24x1xf32>
    %36 = arith.addf %35, %34 : vector<24x1xf32>
    %37 = math.log %36 : vector<24x1xf32>
    %38 = arith.addf %30, %37 : vector<24x1xf32>
    %cst_12 = arith.constant 0.000000e+00 : f32
    %39 = vector.broadcast %cst_12 : f32 to vector<24x1xf32>
    %40 = arith.cmpf oge, %4, %39 : vector<24x1xf32>
    %41 = arith.extui %40 : vector<24x1xi1> to vector<24x1xi32>
    %42 = arith.sitofp %41 : vector<24x1xi32> to vector<24x1xf32>
    %cst_13 = arith.constant dense<0.000000e+00> : vector<1xf32>
    %43 = vector.multi_reduction <add>, %42, %cst_13 [0] : vector<24x1xf32> to vector<1xf32>
    %44 = vector.shape_cast %43 : vector<1xf32> to vector<1x1xf32>
    %cst_14 = arith.constant 0.699999988 : f32
    %45 = vector.broadcast %cst_14 : f32 to vector<1x1xf32>
    %46 = arith.mulf %45, %44 : vector<1x1xf32>
    %cst_15 = arith.constant 9.99999974E-5 : f32
    %47 = vector.broadcast %cst_15 : f32 to vector<1x1xf32>
    %48 = arith.addf %46, %47 : vector<1x1xf32>
    %49 = math.floor %48 : vector<1x1xf32>
    %cst_16 = arith.constant -1.000000e+30 : f32
    %50 = vector.broadcast %cst_16 : f32 to vector<24x1xf32>
    %51 = arith.select %40, %38, %50 : vector<24x1xi1>, vector<24x1xf32>
    %52 = tpu.transpose %51, [1, 0] : vector<24x1xf32> -> vector<1x24xf32>
    %53 = vector.broadcast %52 : vector<1x24xf32> to vector<24x24xf32>
    %54 = vector.broadcast %51 : vector<24x1xf32> to vector<24x24xf32>
    %55 = arith.cmpf ogt, %53, %54 : vector<24x24xf32>
    %56 = vector.broadcast %52 : vector<1x24xf32> to vector<24x24xf32>
    %57 = vector.broadcast %51 : vector<24x1xf32> to vector<24x24xf32>
    %58 = arith.cmpf oeq, %56, %57 : vector<24x24xf32>
    %59 = arith.andi %58, %7 : vector<24x24xi1>
    %60 = arith.ori %55, %59 : vector<24x24xi1>
    %61 = arith.extui %60 : vector<24x24xi1> to vector<24x24xi32>
    %62 = arith.sitofp %61 : vector<24x24xi32> to vector<24x24xf32>
    %cst_17 = arith.constant dense<0.000000e+00> : vector<24x1xf32>
    %63 = tpu.matmul %62, %8, %cst_17 {dimension_numbers = #tpu.dot_dimension_numbers<[1], [0], [0], [1], [0, 0, 1, 1], [], []>} : vector<24x24xf32>, vector<24x1xf32>, vector<24x1xf32> -> vector<24x1xf32>
    %64 = vector.broadcast %49 : vector<1x1xf32> to vector<24x1xf32>
    %65 = arith.cmpf olt, %63, %64 : vector<24x1xf32>
    %66 = arith.andi %65, %40 : vector<24x1xi1>
    %cst_18 = arith.constant 0.000000e+00 : f32
    %67 = vector.broadcast %cst_18 : f32 to vector<24x1xf32>
    %68 = arith.select %66, %38, %67 : vector<24x1xi1>, vector<24x1xf32>
    %cst_19 = arith.constant dense<0.000000e+00> : vector<1xf32>
    %69 = vector.multi_reduction <add>, %68, %cst_19 [0] : vector<24x1xf32> to vector<1xf32>
    %70 = vector.shape_cast %69 : vector<1xf32> to vector<1x1xf32>
    %71 = arith.divf %70, %49 : vector<1x1xf32>
    %72 = vector.extract_strided_slice %1 {offsets = [0, 1], sizes = [24, 4], strides = [1, 1]} : vector<24x15xf32> to vector<24x4xf32>
    %73 = arith.subf %72, %2 : vector<24x4xf32>
    %74 = arith.mulf %73, %73 : vector<24x4xf32>
    %cst_20 = arith.constant dense<0.000000e+00> : vector<24xf32>
    %75 = vector.multi_reduction <add>, %74, %cst_20 [1] : vector<24x4xf32> to vector<24xf32>
    %76 = vector.shape_cast %75 : vector<24xf32> to vector<24x1xf32>
    %cst_21 = arith.constant 4.000000e+00 : f32
    %77 = vector.broadcast %cst_21 : f32 to vector<24x1xf32>
    %78 = arith.divf %76, %77 : vector<24x1xf32>
    %79 = arith.xori %18, %20 : vector<24x1xi1>
    %80 = arith.extui %79 : vector<24x1xi1> to vector<24x1xi32>
    %81 = arith.sitofp %80 : vector<24x1xi32> to vector<24x1xf32>
    %cst_22 = arith.constant dense<0.000000e+00> : vector<1xf32>
    %82 = vector.multi_reduction <add>, %81, %cst_22 [0] : vector<24x1xf32> to vector<1xf32>
    %83 = vector.shape_cast %82 : vector<1xf32> to vector<1x1xf32>
    %cst_23 = arith.constant 0.699999988 : f32
    %84 = vector.broadcast %cst_23 : f32 to vector<1x1xf32>
    %85 = arith.mulf %84, %83 : vector<1x1xf32>
    %cst_24 = arith.constant 9.99999974E-5 : f32
    %86 = vector.broadcast %cst_24 : f32 to vector<1x1xf32>
    %87 = arith.addf %85, %86 : vector<1x1xf32>
    %88 = math.floor %87 : vector<1x1xf32>
    %cst_25 = arith.constant -1.000000e+30 : f32
    %89 = vector.broadcast %cst_25 : f32 to vector<24x1xf32>
    %90 = arith.select %79, %78, %89 : vector<24x1xi1>, vector<24x1xf32>
    %91 = tpu.transpose %90, [1, 0] : vector<24x1xf32> -> vector<1x24xf32>
    %92 = vector.broadcast %91 : vector<1x24xf32> to vector<24x24xf32>
    %93 = vector.broadcast %90 : vector<24x1xf32> to vector<24x24xf32>
    %94 = arith.cmpf ogt, %92, %93 : vector<24x24xf32>
    %95 = vector.broadcast %91 : vector<1x24xf32> to vector<24x24xf32>
    %96 = vector.broadcast %90 : vector<24x1xf32> to vector<24x24xf32>
    %97 = arith.cmpf oeq, %95, %96 : vector<24x24xf32>
    %98 = arith.andi %97, %7 : vector<24x24xi1>
    %99 = arith.ori %94, %98 : vector<24x24xi1>
    %100 = arith.extui %99 : vector<24x24xi1> to vector<24x24xi32>
    %101 = arith.sitofp %100 : vector<24x24xi32> to vector<24x24xf32>
    %cst_26 = arith.constant dense<0.000000e+00> : vector<24x1xf32>
    %102 = tpu.matmul %101, %8, %cst_26 {dimension_numbers = #tpu.dot_dimension_numbers<[1], [0], [0], [1], [0, 0, 1, 1], [], []>} : vector<24x24xf32>, vector<24x1xf32>, vector<24x1xf32> -> vector<24x1xf32>
    %103 = vector.broadcast %88 : vector<1x1xf32> to vector<24x1xf32>
    %104 = arith.cmpf olt, %102, %103 : vector<24x1xf32>
    %105 = arith.andi %104, %79 : vector<24x1xi1>
    %cst_27 = arith.constant 0.000000e+00 : f32
    %106 = vector.broadcast %cst_27 : f32 to vector<24x1xf32>
    %107 = arith.select %105, %78, %106 : vector<24x1xi1>, vector<24x1xf32>
    %cst_28 = arith.constant dense<0.000000e+00> : vector<1xf32>
    %108 = vector.multi_reduction <add>, %107, %cst_28 [0] : vector<24x1xf32> to vector<1xf32>
    %109 = vector.shape_cast %108 : vector<1xf32> to vector<1x1xf32>
    %110 = arith.divf %109, %88 : vector<1x1xf32>
    %cst_29 = arith.constant 0.000000e+00 : f32
    %111 = vector.broadcast %cst_29 : f32 to vector<1x1xf32>
    %112 = arith.cmpf oeq, %83, %111 : vector<1x1xf32>
    %cst_30 = arith.constant 0.000000e+00 : f32
    %113 = vector.broadcast %cst_30 : f32 to vector<1x1xf32>
    %114 = arith.select %112, %113, %110 : vector<1x1xi1>, vector<1x1xf32>
    %115 = vector.extract_strided_slice %1 {offsets = [0, 5], sizes = [24, 10], strides = [1, 1]} : vector<24x15xf32> to vector<24x10xf32>
    %116 = arith.subf %115, %3 : vector<24x10xf32>
    %117 = arith.mulf %116, %116 : vector<24x10xf32>
    %cst_31 = arith.constant dense<0.000000e+00> : vector<24xf32>
    %118 = vector.multi_reduction <add>, %117, %cst_31 [1] : vector<24x10xf32> to vector<24xf32>
    %119 = vector.shape_cast %118 : vector<24xf32> to vector<24x1xf32>
    %cst_32 = arith.constant 1.000000e+01 : f32
    %120 = vector.broadcast %cst_32 : f32 to vector<24x1xf32>
    %121 = arith.divf %119, %120 : vector<24x1xf32>
    %122 = arith.extui %22 : vector<24x1xi1> to vector<24x1xi32>
    %123 = arith.sitofp %122 : vector<24x1xi32> to vector<24x1xf32>
    %cst_33 = arith.constant dense<0.000000e+00> : vector<1xf32>
    %124 = vector.multi_reduction <add>, %123, %cst_33 [0] : vector<24x1xf32> to vector<1xf32>
    %125 = vector.shape_cast %124 : vector<1xf32> to vector<1x1xf32>
    %cst_34 = arith.constant 0.699999988 : f32
    %126 = vector.broadcast %cst_34 : f32 to vector<1x1xf32>
    %127 = arith.mulf %126, %125 : vector<1x1xf32>
    %cst_35 = arith.constant 9.99999974E-5 : f32
    %128 = vector.broadcast %cst_35 : f32 to vector<1x1xf32>
    %129 = arith.addf %127, %128 : vector<1x1xf32>
    %130 = math.floor %129 : vector<1x1xf32>
    %cst_36 = arith.constant -1.000000e+30 : f32
    %131 = vector.broadcast %cst_36 : f32 to vector<24x1xf32>
    %132 = arith.select %22, %121, %131 : vector<24x1xi1>, vector<24x1xf32>
    %133 = tpu.transpose %132, [1, 0] : vector<24x1xf32> -> vector<1x24xf32>
    %134 = vector.broadcast %133 : vector<1x24xf32> to vector<24x24xf32>
    %135 = vector.broadcast %132 : vector<24x1xf32> to vector<24x24xf32>
    %136 = arith.cmpf ogt, %134, %135 : vector<24x24xf32>
    %137 = vector.broadcast %133 : vector<1x24xf32> to vector<24x24xf32>
    %138 = vector.broadcast %132 : vector<24x1xf32> to vector<24x24xf32>
    %139 = arith.cmpf oeq, %137, %138 : vector<24x24xf32>
    %140 = arith.andi %139, %7 : vector<24x24xi1>
    %141 = arith.ori %136, %140 : vector<24x24xi1>
    %142 = arith.extui %141 : vector<24x24xi1> to vector<24x24xi32>
    %143 = arith.sitofp %142 : vector<24x24xi32> to vector<24x24xf32>
    %cst_37 = arith.constant dense<0.000000e+00> : vector<24x1xf32>
    %144 = tpu.matmul %143, %8, %cst_37 {dimension_numbers = #tpu.dot_dimension_numbers<[1], [0], [0], [1], [0, 0, 1, 1], [], []>} : vector<24x24xf32>, vector<24x1xf32>, vector<24x1xf32> -> vector<24x1xf32>
    %145 = vector.broadcast %130 : vector<1x1xf32> to vector<24x1xf32>
    %146 = arith.cmpf olt, %144, %145 : vector<24x1xf32>
    %147 = arith.andi %146, %22 : vector<24x1xi1>
    %cst_38 = arith.constant 0.000000e+00 : f32
    %148 = vector.broadcast %cst_38 : f32 to vector<24x1xf32>
    %149 = arith.select %147, %121, %148 : vector<24x1xi1>, vector<24x1xf32>
    %cst_39 = arith.constant dense<0.000000e+00> : vector<1xf32>
    %150 = vector.multi_reduction <add>, %149, %cst_39 [0] : vector<24x1xf32> to vector<1xf32>
    %151 = vector.shape_cast %150 : vector<1xf32> to vector<1x1xf32>
    %152 = arith.divf %151, %130 : vector<1x1xf32>
    %cst_40 = arith.constant 0.000000e+00 : f32
    %153 = vector.broadcast %cst_40 : f32 to vector<1x1xf32>
    %154 = arith.cmpf oeq, %125, %153 : vector<1x1xf32>
    %cst_41 = arith.constant 0.000000e+00 : f32
    %155 = vector.broadcast %cst_41 : f32 to vector<1x1xf32>
    %156 = arith.select %154, %155, %152 : vector<1x1xi1>, vector<1x1xf32>
    %cst_42 = arith.constant 1.000000e+00 : f32
    %157 = vector.broadcast %cst_42 : f32 to vector<1x1xf32>
    %158 = arith.mulf %157, %71 : vector<1x1xf32>
    %cst_43 = arith.constant 5.000000e-01 : f32
    %159 = vector.broadcast %cst_43 : f32 to vector<1x1xf32>
    %160 = arith.mulf %159, %114 : vector<1x1xf32>
    %161 = arith.addf %158, %160 : vector<1x1xf32>
    %cst_44 = arith.constant 5.000000e-01 : f32
    %162 = vector.broadcast %cst_44 : f32 to vector<1x1xf32>
    %163 = arith.mulf %162, %156 : vector<1x1xf32>
    %164 = arith.addf %161, %163 : vector<1x1xf32>
    %165 = tpu.concatenate %164, %71, %114, %156 in 1 : vector<1x1xf32>, vector<1x1xf32>, vector<1x1xf32>, vector<1x1xf32> -> vector<1x4xf32>
    %c0_45 = arith.constant 0 : index
    %c0_46 = arith.constant 0 : index
    %166 = vector.load %arg2[%c0_45, %c0_46] : memref<1x4xf32, #tpu.memory_space<vmem>>, vector<1x4xf32>
    tpu.vector_store %arg2[%c0_45, %c0_46], %165 {strides = array<i32>} : memref<1x4xf32, #tpu.memory_space<vmem>>, vector<1x4xf32>,
    return
  }
  func.func @transform_0(%arg0: i32) -> (i32, i32) {
    %c0_i32 = arith.constant 0 : i32
    %c0_i32_0 = arith.constant 0 : i32
    %c0_i32_1 = arith.constant 0 : i32
    return %c0_i32, %c0_i32_0 : i32, i32
  }
  func.func @transform_1(%arg0: i32) -> (i32, i32) {
    %c0_i32 = arith.constant 0 : i32
    %c0_i32_0 = arith.constant 0 : i32
    %c0_i32_1 = arith.constant 0 : i32
    return %c0_i32, %c0_i32_0 : i32, i32
  }
}

</mosaic_0001>

<llo_original>
// kernel: tpu_custom_call.1
$region0: #{tpu_custom_call.1}
  #allocation0 [shape = 'u32[]', space=smem, size = 0x4, offset = 0x4, fixed_abs, tag = 'smem constant byte address 0x4 - core index']
  #allocation1 [shape = 'u32[144,128]{1,0:T(1,128)}', space=vmem, size = 0x12000, scoped, tag = 'internal scratch']
  %s0 = inlined_call_operand.hbm [shape: f32[24,30], index: 0, kind: input, shape index: {}]
  %s1 = inlined_call_operand.hbm [shape: f32[1,4], index: 1, kind: output, shape index: {}]
  %s2 = sld [smem:[#allocation0]]
  $region18: #{tpu_custom_call.1} parent=0
    _
  %s4 = ssub.s32 1, %s2
  %s5 = scalar_select 0, %s4, %s2
  $region1: #{tpu_custom_call.1} parent=0
    #allocation2 [shape = 'u8[12288]{0}', space=vmem, size = 0x3000, scoped, tag = 'input window, operand 0, single buffered']
    #allocation3 [shape = 's32[1]{0}', space=sflag, size = 0x4, scoped, tag = 'scoped memory for tpu_custom_call.1']
    #allocation4 [shape = 's32[1]{0}', space=sflag, size = 0x4, scoped, tag = 'scoped memory for tpu_custom_call.1']
    #allocation5 [shape = 'u8[512]{0}', space=vmem, size = 0x400, scoped, tag = 'output window, operand 0, single buffered']
    %6 = vsyncpa [#allocation3], 0
    %7 = vsyncpa [#allocation4], 0
    // Predicated region
    $region2: #{tpu_custom_call.1} parent=1 // pred_check
      _
    $region3: #{tpu_custom_call.1} parent=1 // pred_check_branch
      %9 = sbr.rel (0) target = $region5
    $region4: #{tpu_custom_call.1} parent=1 // pred_region
      %s11 = ssub.s32 384, 384
      %12 = vsyncadd [#allocation3], %s11
      %s13 = sshll.u32 [#allocation2], 4
      %s14 = int_to_ptr.vmem [resolvable:$true] %s13
      %19 = dma.hbm_to_vmem [thread:$0]  %s0, 384, %s14, [#allocation3], 128, 128, 8
    $region5: #{tpu_custom_call.1} parent=1 // pred_fallthru
      _
    // Predicated region
    $region6: #{tpu_custom_call.1} parent=1 // pred_check
      _
    $region7: #{tpu_custom_call.1} parent=1 // pred_check_branch
      %21 = sbr.rel (0) target = $region9
    $region8: #{tpu_custom_call.1} parent=1 // pred_region
      %22 = dma.done [#allocation3], 384
    $region9: #{tpu_custom_call.1} parent=1 // pred_fallthru
      _
    %v23 = vld [vmem:[#allocation2] sm:$0xff]
    %v24 = vld [vmem:[#allocation2 + $0x8] sm:$0xff]
    %v25 = vld [vmem:[#allocation2 + $0x10] sm:$0xff]
    %v26 = vlaneseq
    %v27 = vshrl.u32 %v26, 7
    %v28 = vadd.s32 %v27, 8
    %v29 = vadd.s32 %v27, 16
    %v30 = vlaneseq
    %v31 = vand.u32 %v30, 127
    %vm32 = vcmp.lt.s32.totalorder %v31, %v27
    %vm33 = vcmp.lt.s32.totalorder %v31, %v28
    %vm34 = vcmp.lt.s32.totalorder %v31, %v29
    %v35 = vsub.f32 0.0, %v23
    %v36 = vsub.f32 0.0, %v24
    %v37 = vsub.f32 0.0, %v25
    %v38 = vmul.f32 %v35, 1.442695
    %v39 = vpow.pop %v38
    %v40 = vmul.f32 %v36, 1.442695
    %v41 = vpow.pop %v40
    %v42 = vmul.f32 %v37, 1.442695
    %v43 = vpow.pop %v42
    %v44 = vadd.f32 %v39, 1.0
    %v45 = vadd.f32 %v41, 1.0
    %v46 = vadd.f32 %v43, 1.0
    %v47 = vrcp.pop %v44
    %v48 = vmul.f32 1.0, %v47
    %v49 = vrcp.pop %v45
    %v50 = vmul.f32 1.0, %v49
    %v51 = vrcp.pop %v46
    %v52 = vmul.f32 1.0, %v51
    %vm53 = vcmp.eq.f32.partialorder %v23, 1.0
    %vm54 = vcmp.eq.f32.partialorder %v24, 1.0
    %vm55 = vcmp.eq.f32.partialorder %v25, 1.0
    %vm56 = vcmp.eq.f32.partialorder %v23, -1.0
    %vm57 = vcmp.eq.f32.partialorder %v24, -1.0
    %vm58 = vcmp.eq.f32.partialorder %v25, -1.0
    %vm59 = vcmp.eq.f32.partialorder %v23, -2.0
    %vm60 = vcmp.eq.f32.partialorder %v24, -2.0
    %vm61 = vcmp.eq.f32.partialorder %v25, -2.0
    %vm62 = vmxor %vm53, %vm59
    %vm63 = vmxor %vm54, %vm60
    %vm64 = vmxor %vm55, %vm61
    %v65 = vsel %vm62, 1.0, 0.0
    %v66 = vsel %vm63, 1.0, 0.0
    %v67 = vsel %vm64, 1.0, 0.0
    %v68 = vmax.f32 %v48, 0.0
    %v69 = vmax.f32 %v50, 0.0
    %v70 = vmax.f32 %v52, 0.0
    %74 = vrot.lane.b32.xlu0 %v65, 99
    %v75 = vpop.permute.xlu0 %74
    %76 = vrot.lane.b32.xlu0 %v66, 99
    %v77 = vpop.permute.xlu0 %76
    %78 = vrot.lane.b32.xlu0 %v67, 99
    %v79 = vpop.permute.xlu0 %78
    %v83 = vmul.f32 %v48, %v75
    %v84 = vmul.f32 %v50, %v77
    %v85 = vmul.f32 %v52, %v79
    %v86 = vsub.f32 %v68, %v83
    %v87 = vsub.f32 %v69, %v84
    %v88 = vsub.f32 %v70, %v85
    %v89 = vand.u32 2147483647, %v48
    %v90 = vand.u32 2147483647, %v50
    %v91 = vand.u32 2147483647, %v52
    %v92 = vsub.f32 0.0, %v89
    %v93 = vsub.f32 0.0, %v90
    %v94 = vsub.f32 0.0, %v91
    %v95 = vmul.f32 %v92, 1.442695
    %v96 = vpow.pop %v95
    %v97 = vmul.f32 %v93, 1.442695
    %v98 = vpow.pop %v97
    %v99 = vmul.f32 %v94, 1.442695
    %v100 = vpow.pop %v99
    %v101 = vadd.f32 %v96, 1.0
    %v102 = vadd.f32 %v98, 1.0
    %v103 = vadd.f32 %v100, 1.0
    %v104 = vlog2.pop %v101
    %v105 = vmul.f32 %v104, 0.6931472
    %v106 = vlog2.pop %v102
    %v107 = vmul.f32 %v106, 0.6931472
    %v108 = vlog2.pop %v103
    %v109 = vmul.f32 %v108, 0.6931472
    %v110 = vadd.f32 %v86, %v105
    %v111 = vadd.f32 %v87, %v107
    %v112 = vadd.f32 %v88, %v109
    %vm113 = vcmp.ge.f32.partialorder %v23, 0.0
    %vm114 = vcmp.ge.f32.partialorder %v24, 0.0
    %vm115 = vcmp.ge.f32.partialorder %v25, 0.0
    %v116 = vsel %vm113, 1, 0
    %v117 = vsel %vm114, 1, 0
    %v118 = vsel %vm115, 1, 0
    %v119 = vcvt.s32.f32 %v116
    %v120 = vcvt.s32.f32 %v117
    %v121 = vcvt.s32.f32 %v118
    %vm122 = vcmask 244968
    %v123 = vsel %vm122, %v119, 0.0
    %v124 = vsel %vm122, %v120, 0.0
    %v125 = vadd.f32 %v123, %v124
    %v126 = vsel %vm122, %v121, 0.0
    %v127 = vadd.f32 %v125, %v126
    %v128 = vrot.slane %v127, 4
    %v129 = vadd.f32 %v127, %v128
    %v130 = vrot.slane %v129, 2
    %v131 = vadd.f32 %v129, %v130
    %v132 = vrot.slane %v131, 1
    %v133 = vadd.f32 %v131, %v132
    %v134 = vmul.f32 %v133, 0.7
    %v135 = vadd.f32 %v134, 0.0001
    %v136 = vfloor.f32 %v135
    %140 = vrot.lane.b32.xlu0 %v110, 29
    %v141 = vpop.permute.xlu0 %140
    %142 = vrot.lane.b32.xlu0 %v111, 29
    %v143 = vpop.permute.xlu0 %142
    %144 = vrot.lane.b32.xlu0 %v112, 29
    %v145 = vpop.permute.xlu0 %144
    %v149 = vsel %vm113, %v141, -1e+30
    %v150 = vsel %vm114, %v143, -1e+30
    %v151 = vsel %vm115, %v145, -1e+30
    %155 = vrot.lane.b32.xlu0 %v149, 99
    %v156 = vpop.permute.xlu0 %155
    %157 = vrot.lane.b32.xlu0 %v150, 99
    %v158 = vpop.permute.xlu0 %157
    %159 = vrot.lane.b32.xlu0 %v151, 99
    %v160 = vpop.permute.xlu0 %159
    %164 = vxpose.xlu0.b32.start [1/16] %v156, 128
    %165 = vxpose.xlu0.b32.cont [2/16] %v158, 128
    %166 = vxpose.xlu0.b32.cont [3/16] %v160, 128
    %167 = vxpose.xlu0.b32.cont [4/16] 0.0, 128
    %168 = vxpose.xlu0.b32.cont [5/16] 0.0, 128
    %169 = vxpose.xlu0.b32.cont [6/16] 0.0, 128
    %170 = vxpose.xlu0.b32.cont [7/16] 0.0, 128
    %171 = vxpose.xlu0.b32.cont [8/16] 0.0, 128
    %172 = vxpose.xlu0.b32.cont [9/16] 0.0, 128
    %173 = vxpose.xlu0.b32.cont [10/16] 0.0, 128
    %174 = vxpose.xlu0.b32.cont [11/16] 0.0, 128
    %175 = vxpose.xlu0.b32.cont [12/16] 0.0, 128
    %176 = vxpose.xlu0.b32.cont [13/16] 0.0, 128
    %177 = vxpose.xlu0.b32.cont [14/16] 0.0, 128
    %178 = vxpose.xlu0.b32.cont [15/16] 0.0, 128
    %179 = vxpose.xlu0.b32.end [16/16] 0.0, 128
    %v180 = vpop.trf.xlu0
    %v181 = vpop.trf.xlu0
    %v182 = vpop.trf.xlu0
    %v183 = vpop.trf.xlu0
    %v184 = vpop.trf.xlu0
    %v185 = vpop.trf.xlu0
    %v186 = vpop.trf.xlu0
    %v187 = vpop.trf.xlu0
    %v188 = vpop.trf.xlu0
    %v189 = vpop.trf.xlu0
    %v190 = vpop.trf.xlu0
    %v191 = vpop.trf.xlu0
    %v192 = vpop.trf.xlu0
    %v193 = vpop.trf.xlu0
    %v194 = vpop.trf.xlu0
    %v195 = vpop.trf.xlu0
    %v196 = vlaneseq
    %v197 = vshrl.u32 %v196, 7
    %v198 = vsub.s32 0, %v197
    %v199 = vrot.slane %v180, %v198
    %200 = vset.pattern.permute.xlu0 29
    %201 = vperm.xlu0 %200, %v149
    %v202 = vpop.permute.xlu0 %201
    %204 = vset.pattern.permute.xlu0 29
    %205 = vperm.xlu0 %204, %v150
    %v206 = vpop.permute.xlu0 %205
    %208 = vset.pattern.permute.xlu0 29
    %209 = vperm.xlu0 %208, %v151
    %v210 = vpop.permute.xlu0 %209
    %vm212 = vcmp.gt.f32.partialorder %v199, %v202
    %vm213 = vcmp.gt.f32.partialorder %v199, %v206
    %vm214 = vcmp.gt.f32.partialorder %v199, %v210
    %vm215 = vcmp.eq.f32.partialorder %v199, %v202
    %vm216 = vcmp.eq.f32.partialorder %v199, %v206
    %vm217 = vcmp.eq.f32.partialorder %v199, %v210
    %vm218 = vmand %vm215, %vm32
    %vm219 = vmand %vm216, %vm33
    %vm220 = vmand %vm217, %vm34
    %vm221 = vmor %vm212, %vm218
    %vm222 = vmor %vm213, %vm219
    %vm223 = vmor %vm214, %vm220
    %v224 = vsel %vm221, 1, 0
    %v225 = vsel %vm222, 1, 0
    %v226 = vsel %vm223, 1, 0
    %v227 = vcvt.s32.f32 %v224
    %v228 = vcvt.s32.f32 %v225
    %v229 = vcvt.s32.f32 %v226
    %vm230 = vcmask 195584
    %v232 = vsel %vm230, %v227, 0
    %v235 = vsel %vm230, %v228, 0
    %v238 = vsel %vm230, %v229, 0
    %240 = vmatprep.subr.mxu0 0.0
    %241 = vmatpush1.msra.mxu0 0.0
    %242 = vmatprep.subr.mxu0 0.0
    %243 = vmatpush1.msra.mxu0 0.0
    %244 = vmatprep.subr.mxu0 0.0
    %245 = vmatpush1.msra.mxu0 0.0
    %246 = vmatprep.subr.mxu0 0.0
    %247 = vmatpush1.msra.mxu0 0.0
    %248 = vmatprep.subr.mxu0 0.0
    %249 = vmatpush1.msra.mxu0 0.0
    %250 = vmatprep.subr.mxu0 0.0
    %251 = vmatpush1.msra.mxu0 0.0
    %252 = vmatprep.subr.mxu0 0.0
    %253 = vmatpush1.msra.mxu0 0.0
    %254 = vmatprep.subr.mxu0 0.0
    %255 = vmatpush1.msra.mxu0 0.0
    %256 = vmatprep.subr.mxu0 0.0
    %257 = vmatpush1.msra.mxu0 0.0
    %258 = vmatprep.subr.mxu0 0.0
    %259 = vmatpush1.msra.mxu0 0.0
    %260 = vmatprep.subr.mxu0 0.0
    %261 = vmatpush1.msra.mxu0 0.0
    %262 = vmatprep.subr.mxu0 0.0
    %263 = vmatpush1.msra.mxu0 0.0
    %264 = vmatprep.subr.mxu0 0.0
    %265 = vmatpush1.msra.mxu0 0.0
    %266 = vmatprep.subr.mxu0 0.0
    %267 = vmatpush1.msra.mxu0 1.0
    %268 = vmatprep.subr.mxu0 0.0
    %269 = vmatpush1.msra.mxu0 1.0
    %270 = vmatprep.subr.mxu0 0.0
    %271 = vmatpush1.msra.mxu0 1.0
    %272 = vmatprep.subr.mxu0 0.0
    %273 = vmatpush2.msra.mxu0 0.0
    %274 = vmatprep.subr.mxu0 0.0
    %275 = vmatpush2.msra.mxu0 0.0
    %276 = vmatprep.subr.mxu0 0.0
    %277 = vmatpush2.msra.mxu0 0.0
    %278 = vmatprep.subr.mxu0 0.0
    %279 = vmatpush2.msra.mxu0 0.0
    %280 = vmatprep.subr.mxu0 0.0
    %281 = vmatpush2.msra.mxu0 0.0
    %282 = vmatprep.subr.mxu0 0.0
    %283 = vmatpush2.msra.mxu0 0.0
    %284 = vmatprep.subr.mxu0 0.0
    %285 = vmatpush2.msra.mxu0 0.0
    %286 = vmatprep.subr.mxu0 0.0
    %287 = vmatpush2.msra.mxu0 0.0
    %288 = vmatprep.subr.mxu0 0.0
    %289 = vmatpush2.msra.mxu0 0.0
    %290 = vmatprep.subr.mxu0 0.0
    %291 = vmatpush2.msra.mxu0 0.0
    %292 = vmatprep.subr.mxu0 0.0
    %293 = vmatpush2.msra.mxu0 0.0
    %294 = vmatprep.subr.mxu0 0.0
    %295 = vmatpush2.msra.mxu0 0.0
    %296 = vmatprep.subr.mxu0 0.0
    %297 = vmatpush2.msra.mxu0 0.0
    %298 = vmatprep.subr.mxu0 0.0
    %299 = vmatpush2.msra.mxu0 0.0
    %300 = vmatprep.subr.mxu0 0.0
    %301 = vmatpush2.msra.mxu0 0.0
    %302 = vmatprep.subr.mxu0 0.0
    %303 = vmatpush2.msra.mxu0 0.0
    %304 = vmatprep.mubr.f32.mxu0 0.0
    %305 = vmatmul.mubr.f32.gmra.mxu0 %v232
    %v306 = vpop.f32.mrf.mxu0
    %v307 = vadd.f32 0.0, %v306
    %v308 = vpop.f32.mrf.mxu0
    %309 = vmatprep.mubr.f32.mxu0 0.0
    %310 = vmatmul.mubr.f32.gmra.mxu0 %v235
    %v311 = vpop.f32.mrf.mxu0
    %v312 = vadd.f32 0.0, %v311
    %v313 = vpop.f32.mrf.mxu0
    %314 = vmatprep.mubr.f32.mxu0 0.0
    %315 = vmatmul.mubr.f32.gmra.mxu0 %v238
    %v316 = vpop.f32.mrf.mxu0
    %v317 = vadd.f32 0.0, %v316
    %v318 = vpop.f32.mrf.mxu0
    %319 = vdwg.mxu0
    %321 = vrot.lane.b32.xlu0 %v136, 99
    %v322 = vpop.permute.xlu0 %321
    %vm324 = vcmp.lt.f32.partialorder %v307, %v322
    %vm325 = vcmp.lt.f32.partialorder %v312, %v322
    %vm326 = vcmp.lt.f32.partialorder %v317, %v322
    %327 = vrot.lane.b32.xlu0 %v116, 99
    %v328 = vpop.permute.xlu0 %327
    %329 = vrot.lane.b32.xlu0 %v117, 99
    %v330 = vpop.permute.xlu0 %329
    %331 = vrot.lane.b32.xlu0 %v118, 99
    %v332 = vpop.permute.xlu0 %331
    %vm333 = vcmp.ne.s32.totalorder %v328, 0
    %vm334 = vcmp.ne.s32.totalorder %v330, 0
    %vm335 = vcmp.ne.s32.totalorder %v332, 0
    %vm336 = vmand %vm324, %vm333
    %vm337 = vmand %vm325, %vm334
    %vm338 = vmand %vm326, %vm335
    %v339 = vsel %vm336, %v110, 0.0
    %v340 = vsel %vm337, %v111, 0.0
    %v341 = vsel %vm338, %v112, 0.0
    %vm342 = vcmask 7168
    %v343 = vsel %vm342, %v339, 0.0
    %v344 = vsel %vm342, %v340, 0.0
    %v345 = vadd.f32 %v343, %v344
    %v346 = vsel %vm342, %v341, 0.0
    %v347 = vadd.f32 %v345, %v346
    %v348 = vrot.slane %v347, 4
    %v349 = vadd.f32 %v347, %v348
    %v350 = vrot.slane %v349, 2
    %v351 = vadd.f32 %v349, %v350
    %v352 = vrot.slane %v351, 1
    %v353 = vadd.f32 %v351, %v352
    %v354 = vrcp.pop %v322
    %v355 = vmul.f32 %v353, %v354
    %359 = vrot.lane.b32.xlu0 %v23, 114
    %v360 = vpop.permute.xlu0 %359
    %361 = vrot.lane.b32.xlu0 %v24, 114
    %v362 = vpop.permute.xlu0 %361
    %363 = vrot.lane.b32.xlu0 %v25, 114
    %v364 = vpop.permute.xlu0 %363
    %v368 = vsub.f32 %v23, %v360
    %v369 = vsub.f32 %v24, %v362
    %v370 = vsub.f32 %v25, %v364
    %v371 = vmul.f32 %v368, %v368
    %v372 = vmul.f32 %v369, %v369
    %v373 = vmul.f32 %v370, %v370
    %377 = vrot.lane.b32.xlu0 %v371, 127
    %v378 = vpop.permute.xlu0 %377
    %379 = vrot.lane.b32.xlu0 %v372, 127
    %v380 = vpop.permute.xlu0 %379
    %381 = vrot.lane.b32.xlu0 %v373, 127
    %v382 = vpop.permute.xlu0 %381
    %vm386 = vcmask 31744
    %v387 = vsel %vm386, %v378, 0.0
    %388 = vadd.xlane.f32.xlu0 %v387
    %v389 = vpop.xlane.xlu0 %388
    %v390 = vsel %vm386, %v380, 0.0
    %391 = vadd.xlane.f32.xlu0 %v390
    %v392 = vpop.xlane.xlu0 %391
    %v393 = vsel %vm386, %v382, 0.0
    %394 = vadd.xlane.f32.xlu0 %v393
    %v395 = vpop.xlane.xlu0 %394
    %v396 = vrcp.pop 4.0
    %v397 = vmul.f32 %v389, %v396
    %v398 = vmul.f32 %v392, %v396
    %v399 = vmul.f32 %v395, %v396
    %vm400 = vmxor %vm53, %vm56
    %vm401 = vmxor %vm54, %vm57
    %vm402 = vmxor %vm55, %vm58
    %v403 = vsel %vm400, 1, 0
    %v404 = vsel %vm401, 1, 0
    %v405 = vsel %vm402, 1, 0
    %v406 = vcvt.s32.f32 %v403
    %v407 = vcvt.s32.f32 %v404
    %v408 = vcvt.s32.f32 %v405
    %v409 = vsel %vm122, %v406, 0.0
    %v410 = vsel %vm122, %v407, 0.0
    %v411 = vadd.f32 %v409, %v410
    %v412 = vsel %vm122, %v408, 0.0
    %v413 = vadd.f32 %v411, %v412
    %v414 = vrot.slane %v413, 4
    %v415 = vadd.f32 %v413, %v414
    %v416 = vrot.slane %v415, 2
    %v417 = vadd.f32 %v415, %v416
    %v418 = vrot.slane %v417, 1
    %v419 = vadd.f32 %v417, %v418
    %v420 = vmul.f32 %v419, 0.7
    %v421 = vadd.f32 %v420, 0.0001
    %v422 = vfloor.f32 %v421
    %v423 = vsel %vm400, %v397, -1e+30
    %v424 = vsel %vm401, %v398, -1e+30
    %v425 = vsel %vm402, %v399, -1e+30
    %429 = vrot.lane.b32.xlu0 %v423, 99
    %v430 = vpop.permute.xlu0 %429
    %431 = vrot.lane.b32.xlu0 %v424, 99
    %v432 = vpop.permute.xlu0 %431
    %433 = vrot.lane.b32.xlu0 %v425, 99
    %v434 = vpop.permute.xlu0 %433
    %438 = vxpose.xlu0.b32.start [1/16] %v430, 128
    %439 = vxpose.xlu0.b32.cont [2/16] %v432, 128
    %440 = vxpose.xlu0.b32.cont [3/16] %v434, 128
    %441 = vxpose.xlu0.b32.cont [4/16] 0.0, 128
    %442 = vxpose.xlu0.b32.cont [5/16] 0.0, 128
    %443 = vxpose.xlu0.b32.cont [6/16] 0.0, 128
    %444 = vxpose.xlu0.b32.cont [7/16] 0.0, 128
    %445 = vxpose.xlu0.b32.cont [8/16] 0.0, 128
    %446 = vxpose.xlu0.b32.cont [9/16] 0.0, 128
    %447 = vxpose.xlu0.b32.cont [10/16] 0.0, 128
    %448 = vxpose.xlu0.b32.cont [11/16] 0.0, 128
    %449 = vxpose.xlu0.b32.cont [12/16] 0.0, 128
    %450 = vxpose.xlu0.b32.cont [13/16] 0.0, 128
    %451 = vxpose.xlu0.b32.cont [14/16] 0.0, 128
    %452 = vxpose.xlu0.b32.cont [15/16] 0.0, 128
    %453 = vxpose.xlu0.b32.end [16/16] 0.0, 128
    %v454 = vpop.trf.xlu0
    %v455 = vpop.trf.xlu0
    %v456 = vpop.trf.xlu0
    %v457 = vpop.trf.xlu0
    %v458 = vpop.trf.xlu0
    %v459 = vpop.trf.xlu0
    %v460 = vpop.trf.xlu0
    %v461 = vpop.trf.xlu0
    %v462 = vpop.trf.xlu0
    %v463 = vpop.trf.xlu0
    %v464 = vpop.trf.xlu0
    %v465 = vpop.trf.xlu0
    %v466 = vpop.trf.xlu0
    %v467 = vpop.trf.xlu0
    %v468 = vpop.trf.xlu0
    %v469 = vpop.trf.xlu0
    %v470 = vlaneseq
    %v471 = vshrl.u32 %v470, 7
    %v472 = vsub.s32 0, %v471
    %v473 = vrot.slane %v454, %v472
    %474 = vset.pattern.permute.xlu0 29
    %475 = vperm.xlu0 %474, %v423
    %v476 = vpop.permute.xlu0 %475
    %478 = vset.pattern.permute.xlu0 29
    %479 = vperm.xlu0 %478, %v424
    %v480 = vpop.permute.xlu0 %479
    %482 = vset.pattern.permute.xlu0 29
    %483 = vperm.xlu0 %482, %v425
    %v484 = vpop.permute.xlu0 %483
    %vm486 = vcmp.gt.f32.partialorder %v473, %v476
    %vm487 = vcmp.gt.f32.partialorder %v473, %v480
    %vm488 = vcmp.gt.f32.partialorder %v473, %v484
    %vm489 = vcmp.eq.f32.partialorder %v473, %v476
    %vm490 = vcmp.eq.f32.partialorder %v473, %v480
    %vm491 = vcmp.eq.f32.partialorder %v473, %v484
    %vm492 = vmand %vm489, %vm32
    %vm493 = vmand %vm490, %vm33
    %vm494 = vmand %vm491, %vm34
    %vm495 = vmor %vm486, %vm492
    %vm496 = vmor %vm487, %vm493
    %vm497 = vmor %vm488, %vm494
    %v498 = vsel %vm495, 1, 0
    %v499 = vsel %vm496, 1, 0
    %v500 = vsel %vm497, 1, 0
    %v501 = vcvt.s32.f32 %v498
    %v502 = vcvt.s32.f32 %v499
    %v503 = vcvt.s32.f32 %v500
    %v505 = vsel %vm230, %v501, 0
    %v508 = vsel %vm230, %v502, 0
    %v511 = vsel %vm230, %v503, 0
    %513 = vmatprep.subr.mxu0 0.0
    %514 = vmatpush1.msra.mxu0 0.0
    %515 = vmatprep.subr.mxu0 0.0
    %516 = vmatpush1.msra.mxu0 0.0
    %517 = vmatprep.subr.mxu0 0.0
    %518 = vmatpush1.msra.mxu0 0.0
    %519 = vmatprep.subr.mxu0 0.0
    %520 = vmatpush1.msra.mxu0 0.0
    %521 = vmatprep.subr.mxu0 0.0
    %522 = vmatpush1.msra.mxu0 0.0
    %523 = vmatprep.subr.mxu0 0.0
    %524 = vmatpush1.msra.mxu0 0.0
    %525 = vmatprep.subr.mxu0 0.0
    %526 = vmatpush1.msra.mxu0 0.0
    %527 = vmatprep.subr.mxu0 0.0
    %528 = vmatpush1.msra.mxu0 0.0
    %529 = vmatprep.subr.mxu0 0.0
    %530 = vmatpush1.msra.mxu0 0.0
    %531 = vmatprep.subr.mxu0 0.0
    %532 = vmatpush1.msra.mxu0 0.0
    %533 = vmatprep.subr.mxu0 0.0
    %534 = vmatpush1.msra.mxu0 0.0
    %535 = vmatprep.subr.mxu0 0.0
    %536 = vmatpush1.msra.mxu0 0.0
    %537 = vmatprep.subr.mxu0 0.0
    %538 = vmatpush1.msra.mxu0 0.0
    %539 = vmatprep.subr.mxu0 0.0
    %540 = vmatpush1.msra.mxu0 1.0
    %541 = vmatprep.subr.mxu0 0.0
    %542 = vmatpush1.msra.mxu0 1.0
    %543 = vmatprep.subr.mxu0 0.0
    %544 = vmatpush1.msra.mxu0 1.0
    %545 = vmatprep.subr.mxu0 0.0
    %546 = vmatpush2.msra.mxu0 0.0
    %547 = vmatprep.subr.mxu0 0.0
    %548 = vmatpush2.msra.mxu0 0.0
    %549 = vmatprep.subr.mxu0 0.0
    %550 = vmatpush2.msra.mxu0 0.0
    %551 = vmatprep.subr.mxu0 0.0
    %552 = vmatpush2.msra.mxu0 0.0
    %553 = vmatprep.subr.mxu0 0.0
    %554 = vmatpush2.msra.mxu0 0.0
    %555 = vmatprep.subr.mxu0 0.0
    %556 = vmatpush2.msra.mxu0 0.0
    %557 = vmatprep.subr.mxu0 0.0
    %558 = vmatpush2.msra.mxu0 0.0
    %559 = vmatprep.subr.mxu0 0.0
    %560 = vmatpush2.msra.mxu0 0.0
    %561 = vmatprep.subr.mxu0 0.0
    %562 = vmatpush2.msra.mxu0 0.0
    %563 = vmatprep.subr.mxu0 0.0
    %564 = vmatpush2.msra.mxu0 0.0
    %565 = vmatprep.subr.mxu0 0.0
    %566 = vmatpush2.msra.mxu0 0.0
    %567 = vmatprep.subr.mxu0 0.0
    %568 = vmatpush2.msra.mxu0 0.0
    %569 = vmatprep.subr.mxu0 0.0
    %570 = vmatpush2.msra.mxu0 0.0
    %571 = vmatprep.subr.mxu0 0.0
    %572 = vmatpush2.msra.mxu0 0.0
    %573 = vmatprep.subr.mxu0 0.0
    %574 = vmatpush2.msra.mxu0 0.0
    %575 = vmatprep.subr.mxu0 0.0
    %576 = vmatpush2.msra.mxu0 0.0
    %577 = vmatprep.mubr.f32.mxu0 0.0
    %578 = vmatmul.mubr.f32.gmra.mxu0 %v505
    %v579 = vpop.f32.mrf.mxu0
    %v580 = vadd.f32 0.0, %v579
    %v581 = vpop.f32.mrf.mxu0
    %582 = vmatprep.mubr.f32.mxu0 0.0
    %583 = vmatmul.mubr.f32.gmra.mxu0 %v508
    %v584 = vpop.f32.mrf.mxu0
    %v585 = vadd.f32 0.0, %v584
    %v586 = vpop.f32.mrf.mxu0
    %587 = vmatprep.mubr.f32.mxu0 0.0
    %588 = vmatmul.mubr.f32.gmra.mxu0 %v511
    %v589 = vpop.f32.mrf.mxu0
    %v590 = vadd.f32 0.0, %v589
    %v591 = vpop.f32.mrf.mxu0
    %592 = vdwg.mxu0
    %594 = vrot.lane.b32.xlu0 %v422, 99
    %v595 = vpop.permute.xlu0 %594
    %vm597 = vcmp.lt.f32.partialorder %v580, %v595
    %vm598 = vcmp.lt.f32.partialorder %v585, %v595
    %vm599 = vcmp.lt.f32.partialorder %v590, %v595
    %600 = vrot.lane.b32.xlu0 %v403, 99
    %v601 = vpop.permute.xlu0 %600
    %602 = vrot.lane.b32.xlu0 %v404, 99
    %v603 = vpop.permute.xlu0 %602
    %604 = vrot.lane.b32.xlu0 %v405, 99
    %v605 = vpop.permute.xlu0 %604
    %vm606 = vcmp.ne.s32.totalorder %v601, 0
    %vm607 = vcmp.ne.s32.totalorder %v603, 0
    %vm608 = vcmp.ne.s32.totalorder %v605, 0
    %vm609 = vmand %vm597, %vm606
    %vm610 = vmand %vm598, %vm607
    %vm611 = vmand %vm599, %vm608
    %v612 = vsel %vm609, %v397, 0.0
    %v613 = vsel %vm610, %v398, 0.0
    %v614 = vsel %vm611, %v399, 0.0
    %v615 = vsel %vm342, %v612, 0.0
    %v616 = vsel %vm342, %v613, 0.0
    %v617 = vadd.f32 %v615, %v616
    %v618 = vsel %vm342, %v614, 0.0
    %v619 = vadd.f32 %v617, %v618
    %v620 = vrot.slane %v619, 4
    %v621 = vadd.f32 %v619, %v620
    %v622 = vrot.slane %v621, 2
    %v623 = vadd.f32 %v621, %v622
    %v624 = vrot.slane %v623, 1
    %v625 = vadd.f32 %v623, %v624
    %v626 = vrcp.pop %v595
    %v627 = vmul.f32 %v625, %v626
    %vm628 = vcmp.eq.f32.partialorder %v419, 0.0
    %630 = vrot.lane.b32.xlu0 %v627, 29
    %v631 = vpop.permute.xlu0 %630
    %v633 = vsel %vm628, 0.0, %v631
    %634 = vrot.lane.b32.xlu0 %v371, 123
    %v635 = vpop.permute.xlu0 %634
    %636 = vrot.lane.b32.xlu0 %v372, 123
    %v637 = vpop.permute.xlu0 %636
    %638 = vrot.lane.b32.xlu0 %v373, 123
    %v639 = vpop.permute.xlu0 %638
    %vm643 = vcmask 80896
    %v644 = vsel %vm643, %v635, 0.0
    %645 = vadd.xlane.f32.xlu0 %v644
    %v646 = vpop.xlane.xlu0 %645
    %v647 = vsel %vm643, %v637, 0.0
    %648 = vadd.xlane.f32.xlu0 %v647
    %v649 = vpop.xlane.xlu0 %648
    %v650 = vsel %vm643, %v639, 0.0
    %651 = vadd.xlane.f32.xlu0 %v650
    %v652 = vpop.xlane.xlu0 %651
    %v653 = vrcp.pop 10.0
    %v654 = vmul.f32 %v646, %v653
    %v655 = vmul.f32 %v649, %v653
    %v656 = vmul.f32 %v652, %v653
    %v657 = vsel %vm59, 1, 0
    %v658 = vsel %vm60, 1, 0
    %v659 = vsel %vm61, 1, 0
    %v660 = vcvt.s32.f32 %v657
    %v661 = vcvt.s32.f32 %v658
    %v662 = vcvt.s32.f32 %v659
    %v663 = vsel %vm122, %v660, 0.0
    %v664 = vsel %vm122, %v661, 0.0
    %v665 = vadd.f32 %v663, %v664
    %v666 = vsel %vm122, %v662, 0.0
    %v667 = vadd.f32 %v665, %v666
    %v668 = vrot.slane %v667, 4
    %v669 = vadd.f32 %v667, %v668
    %v670 = vrot.slane %v669, 2
    %v671 = vadd.f32 %v669, %v670
    %v672 = vrot.slane %v671, 1
    %v673 = vadd.f32 %v671, %v672
    %v674 = vmul.f32 %v673, 0.7
    %v675 = vadd.f32 %v674, 0.0001
    %v676 = vfloor.f32 %v675
    %v677 = vsel %vm59, %v654, -1e+30
    %v678 = vsel %vm60, %v655, -1e+30
    %v679 = vsel %vm61, %v656, -1e+30
    %683 = vrot.lane.b32.xlu0 %v677, 99
    %v684 = vpop.permute.xlu0 %683
    %685 = vrot.lane.b32.xlu0 %v678, 99
    %v686 = vpop.permute.xlu0 %685
    %687 = vrot.lane.b32.xlu0 %v679, 99
    %v688 = vpop.permute.xlu0 %687
    %692 = vxpose.xlu0.b32.start [1/16] %v684, 128
    %693 = vxpose.xlu0.b32.cont [2/16] %v686, 128
    %694 = vxpose.xlu0.b32.cont [3/16] %v688, 128
    %695 = vxpose.xlu0.b32.cont [4/16] 0.0, 128
    %696 = vxpose.xlu0.b32.cont [5/16] 0.0, 128
    %697 = vxpose.xlu0.b32.cont [6/16] 0.0, 128
    %698 = vxpose.xlu0.b32.cont [7/16] 0.0, 128
    %699 = vxpose.xlu0.b32.cont [8/16] 0.0, 128
    %700 = vxpose.xlu0.b32.cont [9/16] 0.0, 128
    %701 = vxpose.xlu0.b32.cont [10/16] 0.0, 128
    %702 = vxpose.xlu0.b32.cont [11/16] 0.0, 128
    %703 = vxpose.xlu0.b32.cont [12/16] 0.0, 128
    %704 = vxpose.xlu0.b32.cont [13/16] 0.0, 128
    %705 = vxpose.xlu0.b32.cont [14/16] 0.0, 128
    %706 = vxpose.xlu0.b32.cont [15/16] 0.0, 128
    %707 = vxpose.xlu0.b32.end [16/16] 0.0, 128
    %v708 = vpop.trf.xlu0
    %v709 = vpop.trf.xlu0
    %v710 = vpop.trf.xlu0
    %v711 = vpop.trf.xlu0
    %v712 = vpop.trf.xlu0
    %v713 = vpop.trf.xlu0
    %v714 = vpop.trf.xlu0
    %v715 = vpop.trf.xlu0
    %v716 = vpop.trf.xlu0
    %v717 = vpop.trf.xlu0
    %v718 = vpop.trf.xlu0
    %v719 = vpop.trf.xlu0
    %v720 = vpop.trf.xlu0
    %v721 = vpop.trf.xlu0
    %v722 = vpop.trf.xlu0
    %v723 = vpop.trf.xlu0
    %v724 = vlaneseq
    %v725 = vshrl.u32 %v724, 7
    %v726 = vsub.s32 0, %v725
    %v727 = vrot.slane %v708, %v726
    %728 = vset.pattern.permute.xlu0 29
    %729 = vperm.xlu0 %728, %v677
    %v730 = vpop.permute.xlu0 %729
    %732 = vset.pattern.permute.xlu0 29
    %733 = vperm.xlu0 %732, %v678
    %v734 = vpop.permute.xlu0 %733
    %736 = vset.pattern.permute.xlu0 29
    %737 = vperm.xlu0 %736, %v679
    %v738 = vpop.permute.xlu0 %737
    %vm740 = vcmp.gt.f32.partialorder %v727, %v730
    %vm741 = vcmp.gt.f32.partialorder %v727, %v734
    %vm742 = vcmp.gt.f32.partialorder %v727, %v738
    %vm743 = vcmp.eq.f32.partialorder %v727, %v730
    %vm744 = vcmp.eq.f32.partialorder %v727, %v734
    %vm745 = vcmp.eq.f32.partialorder %v727, %v738
    %vm746 = vmand %vm743, %vm32
    %vm747 = vmand %vm744, %vm33
    %vm748 = vmand %vm745, %vm34
    %vm749 = vmor %vm740, %vm746
    %vm750 = vmor %vm741, %vm747
    %vm751 = vmor %vm742, %vm748
    %v752 = vsel %vm749, 1, 0
    %v753 = vsel %vm750, 1, 0
    %v754 = vsel %vm751, 1, 0
    %v755 = vcvt.s32.f32 %v752
    %v756 = vcvt.s32.f32 %v753
    %v757 = vcvt.s32.f32 %v754
    %v759 = vsel %vm230, %v755, 0
    %v762 = vsel %vm230, %v756, 0
    %v765 = vsel %vm230, %v757, 0
    %767 = vmatprep.subr.mxu0 0.0
    %768 = vmatpush1.msra.mxu0 0.0
    %769 = vmatprep.subr.mxu0 0.0
    %770 = vmatpush1.msra.mxu0 0.0
    %771 = vmatprep.subr.mxu0 0.0
    %772 = vmatpush1.msra.mxu0 0.0
    %773 = vmatprep.subr.mxu0 0.0
    %774 = vmatpush1.msra.mxu0 0.0
    %775 = vmatprep.subr.mxu0 0.0
    %776 = vmatpush1.msra.mxu0 0.0
    %777 = vmatprep.subr.mxu0 0.0
    %778 = vmatpush1.msra.mxu0 0.0
    %779 = vmatprep.subr.mxu0 0.0
    %780 = vmatpush1.msra.mxu0 0.0
    %781 = vmatprep.subr.mxu0 0.0
    %782 = vmatpush1.msra.mxu0 0.0
    %783 = vmatprep.subr.mxu0 0.0
    %784 = vmatpush1.msra.mxu0 0.0
    %785 = vmatprep.subr.mxu0 0.0
    %786 = vmatpush1.msra.mxu0 0.0
    %787 = vmatprep.subr.mxu0 0.0
    %788 = vmatpush1.msra.mxu0 0.0
    %789 = vmatprep.subr.mxu0 0.0
    %790 = vmatpush1.msra.mxu0 0.0
    %791 = vmatprep.subr.mxu0 0.0
    %792 = vmatpush1.msra.mxu0 0.0
    %793 = vmatprep.subr.mxu0 0.0
    %794 = vmatpush1.msra.mxu0 1.0
    %795 = vmatprep.subr.mxu0 0.0
    %796 = vmatpush1.msra.mxu0 1.0
    %797 = vmatprep.subr.mxu0 0.0
    %798 = vmatpush1.msra.mxu0 1.0
    %799 = vmatprep.subr.mxu0 0.0
    %800 = vmatpush2.msra.mxu0 0.0
    %801 = vmatprep.subr.mxu0 0.0
    %802 = vmatpush2.msra.mxu0 0.0
    %803 = vmatprep.subr.mxu0 0.0
    %804 = vmatpush2.msra.mxu0 0.0
    %805 = vmatprep.subr.mxu0 0.0
    %806 = vmatpush2.msra.mxu0 0.0
    %807 = vmatprep.subr.mxu0 0.0
    %808 = vmatpush2.msra.mxu0 0.0
    %809 = vmatprep.subr.mxu0 0.0
    %810 = vmatpush2.msra.mxu0 0.0
    %811 = vmatprep.subr.mxu0 0.0
    %812 = vmatpush2.msra.mxu0 0.0
    %813 = vmatprep.subr.mxu0 0.0
    %814 = vmatpush2.msra.mxu0 0.0
    %815 = vmatprep.subr.mxu0 0.0
    %816 = vmatpush2.msra.mxu0 0.0
    %817 = vmatprep.subr.mxu0 0.0
    %818 = vmatpush2.msra.mxu0 0.0
    %819 = vmatprep.subr.mxu0 0.0
    %820 = vmatpush2.msra.mxu0 0.0
    %821 = vmatprep.subr.mxu0 0.0
    %822 = vmatpush2.msra.mxu0 0.0
    %823 = vmatprep.subr.mxu0 0.0
    %824 = vmatpush2.msra.mxu0 0.0
    %825 = vmatprep.subr.mxu0 0.0
    %826 = vmatpush2.msra.mxu0 0.0
    %827 = vmatprep.subr.mxu0 0.0
    %828 = vmatpush2.msra.mxu0 0.0
    %829 = vmatprep.subr.mxu0 0.0
    %830 = vmatpush2.msra.mxu0 0.0
    %831 = vmatprep.mubr.f32.mxu0 0.0
    %832 = vmatmul.mubr.f32.gmra.mxu0 %v759
    %v833 = vpop.f32.mrf.mxu0
    %v834 = vadd.f32 0.0, %v833
    %v835 = vpop.f32.mrf.mxu0
    %836 = vmatprep.mubr.f32.mxu0 0.0
    %837 = vmatmul.mubr.f32.gmra.mxu0 %v762
    %v838 = vpop.f32.mrf.mxu0
    %v839 = vadd.f32 0.0, %v838
    %v840 = vpop.f32.mrf.mxu0
    %841 = vmatprep.mubr.f32.mxu0 0.0
    %842 = vmatmul.mubr.f32.gmra.mxu0 %v765
    %v843 = vpop.f32.mrf.mxu0
    %v844 = vadd.f32 0.0, %v843
    %v845 = vpop.f32.mrf.mxu0
    %846 = vdwg.mxu0
    %848 = vrot.lane.b32.xlu0 %v676, 99
    %v849 = vpop.permute.xlu0 %848
    %vm851 = vcmp.lt.f32.partialorder %v834, %v849
    %vm852 = vcmp.lt.f32.partialorder %v839, %v849
    %vm853 = vcmp.lt.f32.partialorder %v844, %v849
    %854 = vrot.lane.b32.xlu0 %v657, 99
    %v855 = vpop.permute.xlu0 %854
    %856 = vrot.lane.b32.xlu0 %v658, 99
    %v857 = vpop.permute.xlu0 %856
    %858 = vrot.lane.b32.xlu0 %v659, 99
    %v859 = vpop.permute.xlu0 %858
    %vm860 = vcmp.ne.s32.totalorder %v855, 0
    %vm861 = vcmp.ne.s32.totalorder %v857, 0
    %vm862 = vcmp.ne.s32.totalorder %v859, 0
    %vm863 = vmand %vm851, %vm860
    %vm864 = vmand %vm852, %vm861
    %vm865 = vmand %vm853, %vm862
    %v866 = vsel %vm863, %v654, 0.0
    %v867 = vsel %vm864, %v655, 0.0
    %v868 = vsel %vm865, %v656, 0.0
    %v869 = vsel %vm342, %v866, 0.0
    %v870 = vsel %vm342, %v867, 0.0
    %v871 = vadd.f32 %v869, %v870
    %v872 = vsel %vm342, %v868, 0.0
    %v873 = vadd.f32 %v871, %v872
    %v874 = vrot.slane %v873, 4
    %v875 = vadd.f32 %v873, %v874
    %v876 = vrot.slane %v875, 2
    %v877 = vadd.f32 %v875, %v876
    %v878 = vrot.slane %v877, 1
    %v879 = vadd.f32 %v877, %v878
    %v880 = vrcp.pop %v849
    %v881 = vmul.f32 %v879, %v880
    %vm882 = vcmp.eq.f32.partialorder %v673, 0.0
    %884 = vrot.lane.b32.xlu0 %v881, 29
    %v885 = vpop.permute.xlu0 %884
    %v887 = vsel %vm882, 0.0, %v885
    %v888 = vmul.f32 %v633, 0.5
    %890 = vrot.lane.b32.xlu0 %v888, 99
    %v891 = vpop.permute.xlu0 %890
    %v893 = vadd.f32 %v355, %v891
    %v894 = vmul.f32 %v887, 0.5
    %896 = vrot.lane.b32.xlu0 %v894, 99
    %v897 = vpop.permute.xlu0 %896
    %v899 = vadd.f32 %v893, %v897
    %901 = vrot.lane.b32.xlu0 %v355, 1
    %v902 = vpop.permute.xlu0 %901
    %905 = vrot.lane.b32.xlu0 %v633, 101
    %v906 = vpop.permute.xlu0 %905
    %909 = vrot.lane.b32.xlu0 %v887, 102
    %v910 = vpop.permute.xlu0 %909
    %v912 = vsel %vm342, %v899, %v902
    %vm913 = vcmask 15360
    %v914 = vsel %vm913, %v912, %v906
    %vm915 = vcmask 23552
    %v916 = vsel %vm915, %v914, %v910
    %vm917 = vcmask 24576
    %918 = vst.msk [vmem:[#allocation5] sm:$0x1] %vm917, %v916
    // Predicated region
    $region10: #{tpu_custom_call.1} parent=1 // pred_check
      _
    $region11: #{tpu_custom_call.1} parent=1 // pred_check_branch
      %920 = sbr.rel (0) target = $region13
    $region12: #{tpu_custom_call.1} parent=1 // pred_region
      %s922 = ssub.s32 16, 16
      %923 = vsyncadd [#allocation4], %s922
      %s925 = sshll.u32 [#allocation5], 4
      %s926 = int_to_ptr.vmem [resolvable:$true] %s925
      %928 = dma.vmem_to_hbm [thread:$0]  %s926, 16, %s1, [#allocation4]
    $region13: #{tpu_custom_call.1} parent=1 // pred_fallthru
      _
    // Predicated region
    $region14: #{tpu_custom_call.1} parent=1 // pred_check
      _
    $region15: #{tpu_custom_call.1} parent=1 // pred_check_branch
      %930 = sbr.rel (0) target = $region17
    $region16: #{tpu_custom_call.1} parent=1 // pred_region
      %931 = dma.done [#allocation4], 16
    $region17: #{tpu_custom_call.1} parent=1 // pred_fallthru
      _
    %932 = vsyncpa [#allocation3], 1
    %933 = vsyncpa [#allocation4], 1

</llo_original>
